<compile_context>
chip_gen: v7x
topology: tpu7x:2x2x1
jax: 0.10.0
libtpu: 0.0.40
codegen_flags: <defaults>
</compile_context>

<pallas_src>
import functools

import numpy as np
import jax
import jax.numpy as jnp
from jax.experimental import pallas as pl
from jax.experimental.pallas import tpu as pltpu


# ----------------------------------------------------------------------------
# Fused Pallas kernel: relu(conv2(relu(conv1(x)))) as two bf16 MXU matmuls.
# ----------------------------------------------------------------------------
def _fused_conv_kernel(a_ref, w1_ref, w2m_ref, b2_ref, o_ref, taps_ref):
    # a_ref    : (T*M2, K1+1) bf16  conv1 patches, already gathered per conv2
    #                               tap & output position (ones column folds
    #                               conv1 bias; padded taps are all-zero rows)
    # w1_ref   : (K1+1, C1)  bf16   conv1 weights + bias row
    # w2m_ref  : (T*C1, C2)  bf16   conv2 weights, rows ordered (tap, ci)
    # b2_ref   : (1, C2)     f32    conv2 bias
    # o_ref    : (N*H2, W2*C2) f32  lane-dense output (rows (b,ho), cols (wo,co))
    # taps_ref : (M2, T*C1)  f32    VMEM scratch for the tap re-pack
    num_taps = 9
    tm2 = a_ref.shape[0]
    m2 = tm2 // num_taps
    c1 = w1_ref.shape[1]
    c2 = w2m_ref.shape[1]
    nh2, wc2 = o_ref.shape
    w_out = wc2 // c2

    # conv1 (+ folded bias) on every tap-gathered patch row, then ReLU.
    # Padded conv2 taps have all-zero rows -> relu(0) == 0, i.e. zero padding.
    z = jnp.dot(a_ref[...], w1_ref[...], preferred_element_type=jnp.float32)
    z = jnp.maximum(z, 0.0)                                   # (T*M2, C1) f32

    # Re-pack the 9 taps along lanes -> (M2, T*C1): this IS conv2's im2col.
    # Static sublane slices + static lane-slice stores; no reshape/concat.
    for t in range(num_taps):
        taps_ref[:, t * c1:(t + 1) * c1] = z[t * m2:(t + 1) * m2, :]

    # conv2 as ONE MXU matmul (K = T*C1 = 144), bias (f32) + ReLU.
    res = jnp.dot(taps_ref[...].astype(jnp.bfloat16), w2m_ref[...],
                  preferred_element_type=jnp.float32)         # (M2, C2)
    res = jnp.maximum(res + b2_ref[...], 0.0)

    # Lane-dense output: rows of `res` are ordered (wo, b, ho), so each wo-slab
    # is contiguous and lands at lane offset wo*C2 -> (N*H2, W2*C2).
    for w in range(w_out):
        o_ref[:, w * c2:(w + 1) * c2] = res[w * nh2:(w + 1) * nh2, :]


# ----------------------------------------------------------------------------
# Host-side helpers (run under jit / at trace time)
# ----------------------------------------------------------------------------
def _conv_out_size(size, k=3, stride=2, pad=1):
    return (size + 2 * pad - k) // stride + 1


@functools.lru_cache(maxsize=None)
def _conv2_gather(n, h1, w1, h2, w2):
    """Row-gather indices composing conv2's (pad=1, stride=2) im2col with the
    conv1 patch matrix.  Rows are tap-major; within a tap, output positions are
    ordered (wo, b, ho) so the kernel can emit a lane-dense (N*H2, W2*C2) output
    with static contiguous slices.  `valid` zeroes padded taps."""
    t_taps = 9
    m2 = n * h2 * w2
    idx = np.zeros((t_taps * m2,), np.int32)
    valid = np.zeros((t_taps * m2,), np.float32)
    for kh in range(3):
        for kw in range(3):
            t = kh * 3 + kw
            for wo in range(w2):
                for b in range(n):
                    for ho in range(h2):
                        m = wo * (n * h2) + b * h2 + ho       # (wo, b, ho)-major
                        r = 2 * ho + kh - 1
                        c = 2 * wo + kw - 1
                        if 0 <= r < h1 and 0 <= c < w1:
                            idx[t * m2 + m] = b * h1 * w1 + r * w1 + c
                            valid[t * m2 + m] = 1.0
    return idx, valid


# ----------------------------------------------------------------------------
# Full model
# ----------------------------------------------------------------------------
def init_params(key):
    # PyTorch Conv2d weight layout is (Cout, Cin, Kh, Kw); we generate in HWIO.
    k1, k2, k3, k4, k5, k6 = jax.random.split(key, 6)
    return {
        "conv1_w": jax.random.normal(k1, (3, 3, 8, 16), jnp.float32) * 0.05,
        "conv1_b": jax.random.normal(k2, (16,), jnp.float32) * 0.05,
        "conv2_w": jax.random.normal(k3, (3, 3, 16, 32), jnp.float32) * 0.05,
        "conv2_b": jax.random.normal(k4, (32,), jnp.float32) * 0.05,
        # conv3 params mirror the PyTorch module, but v5 = conv3(x1) is dead
        # code in the forward and is intentionally NOT computed (do not "fix").
        "conv3_w": jax.random.normal(k5, (3, 3, 8, 32), jnp.float32) * 0.05,
        "conv3_b": jax.random.normal(k6, (32,), jnp.float32) * 0.05,
    }


@jax.jit
def model_forward(params, x_nchw):
    n, cin, h, w = x_nchw.shape
    x = jnp.transpose(x_nchw, (0, 2, 3, 1))                   # NCHW -> NHWC

    h1, w1s = _conv_out_size(h), _conv_out_size(w)
    h2, w2s = _conv_out_size(h1), _conv_out_size(w1s)
    c1 = params["conv1_w"].shape[-1]
    c2 = params["conv2_w"].shape[-1]
    m2 = n * h2 * w2s

    # conv1 im2col (+ ones column for the folded conv1 bias); fused XLA ops.
    xp = jnp.pad(x, ((0, 0), (1, 1), (1, 1), (0, 0)))
    cols = [xp[:, sh:sh + 2 * h1:2, sw:sw + 2 * w1s:2, :]
            for sh in range(3) for sw in range(3)]
    a1 = jnp.concatenate(cols + [jnp.ones((n, h1, w1s, 1), x.dtype)], axis=-1)
    a1 = a1.reshape(n * h1 * w1s, 9 * cin + 1)                # (M1, K1+1)

    # Compose conv2's padded stride-2 im2col as a constant row-gather of a1.
    # Padded taps -> all-zero rows (incl. ones column) so relu(conv1) == 0.
    idx_np, valid_np = _conv2_gather(n, h1, w1s, h2, w2s)
    a2 = jnp.take(a1, jnp.asarray(idx_np), axis=0) * jnp.asarray(valid_np)[:, None]
    a2 = a2.astype(jnp.bfloat16)                              # (9*M2, K1+1)

    w1_aug = jnp.concatenate(
        [params["conv1_w"].reshape(9 * cin, c1),
         params["conv1_b"].reshape(1, c1)], axis=0).astype(jnp.bfloat16)
    w2m = params["conv2_w"].reshape(9 * c1, c2).astype(jnp.bfloat16)
    b2 = params["conv2_b"].reshape(1, c2)                     # f32

    # Single fused launch, no grid (latency-bound at this size; everything
    # fits comfortably in VMEM and nothing scales quadratically any more).
    out2d = pl.pallas_call(
        _fused_conv_kernel,
        out_shape=jax.ShapeDtypeStruct((n * h2, w2s * c2), jnp.float32),
        in_specs=[pl.BlockSpec(memory_space=pltpu.VMEM)] * 4,
        out_specs=pl.BlockSpec(memory_space=pltpu.VMEM),
        scratch_shapes=[pltpu.VMEM((m2, 9 * c1), jnp.float32)],
    )(a2, w1_aug, w2m, b2)

    # v5 = conv3(x1) from the PyTorch forward is dead code -> elided.
    out = out2d.reshape(n, h2, w2s, c2)
    return jnp.transpose(out, (0, 3, 1, 2))                   # back to NCHW


def _reference_forward(params, x_nchw):
    # Pure-JAX f32 reference (lax conv) for a sanity check.
    x = jnp.transpose(x_nchw, (0, 2, 3, 1))
    dn = jax.lax.conv_dimension_numbers(x.shape, params["conv1_w"].shape,
                                        ("NHWC", "HWIO", "NHWC"))

    def conv(xin, wgt, b):
        y = jax.lax.conv_general_dilated(xin, wgt, (2, 2), ((1, 1), (1, 1)),
                                         dimension_numbers=dn)
        return y + b[None, None, None, :]

    v2 = jax.nn.relu(conv(x, params["conv1_w"], params["conv1_b"]))
    v4 = jax.nn.relu(conv(v2, params["conv2_w"], params["conv2_b"]))
    return jnp.transpose(v4, (0, 3, 1, 2))


if __name__ == "__main__":
    key = jax.random.PRNGKey(0)
    kx, kp = jax.random.split(key)

    # Small shapes consistent with the module: N=2, Cin=8, spatial=16.
    x1 = jax.random.normal(kx, (2, 8, 16, 16), jnp.float32)
    params = init_params(kp)

    out = jax.block_until_ready(model_forward(params, x1))
    assert out.shape == (2, 32, 4, 4), out.shape

    ref = jax.block_until_ready(_reference_forward(params, x1))
    # bf16 MXU operands -> tolerance loosened vs the f32 reference.
    max_err = float(jnp.max(jnp.abs(out - ref)))
    assert jnp.allclose(out, ref, rtol=2e-2, atol=2e-2), (
        f"mismatch vs reference (max abs err {max_err})")

    print("KERNEL_OK")
</pallas_src>

<mosaic_0001>
module attributes {stable_mosaic.version = 11 : i64} {
  func.func @_fused_conv_kernel(%arg0: memref<288x73xbf16, #tpu.memory_space<vmem>>, %arg1: memref<73x16xbf16, #tpu.memory_space<vmem>>, %arg2: memref<144x32xbf16, #tpu.memory_space<vmem>>, %arg3: memref<1x32xf32, #tpu.memory_space<vmem>>, %arg4: memref<8x128xf32, #tpu.memory_space<vmem>>, %arg5: memref<32x144xf32, #tpu.memory_space<vmem>>) attributes {dimension_semantics = [], scalar_prefetch = 0 : i64, scratch_operands = 1 : i64, tpu.core_type = #tpu.core_type<tc>} {
    %c0 = arith.constant 0 : index
    %c0_0 = arith.constant 0 : index
    %0 = vector.load %arg0[%c0, %c0_0] : memref<288x73xbf16, #tpu.memory_space<vmem>>, vector<288x73xbf16>
    %c0_1 = arith.constant 0 : index
    %c0_2 = arith.constant 0 : index
    %1 = vector.load %arg1[%c0_1, %c0_2] : memref<73x16xbf16, #tpu.memory_space<vmem>>, vector<73x16xbf16>
    %cst = arith.constant dense<0.000000e+00> : vector<288x16xf32>
    %2 = tpu.matmul %0, %1, %cst {dimension_numbers = #tpu.dot_dimension_numbers<[1], [0], [0], [1], [0, 0, 1, 1], [], []>} : vector<288x73xbf16>, vector<73x16xbf16>, vector<288x16xf32> -> vector<288x16xf32>
    %cst_3 = arith.constant 0.000000e+00 : f32
    %3 = vector.broadcast %cst_3 : f32 to vector<288x16xf32>
    %4 = arith.maximumf %2, %3 : vector<288x16xf32>
    %5 = vector.extract_strided_slice %4 {offsets = [0, 0], sizes = [32, 16], strides = [1, 1]} : vector<288x16xf32> to vector<32x16xf32>
    %c0_4 = arith.constant 0 : index
    %c0_5 = arith.constant 0 : index
    %6 = vector.load %arg5[%c0_4, %c0_5] : memref<32x144xf32, #tpu.memory_space<vmem>>, vector<32x16xf32>
    tpu.vector_store %arg5[%c0_4, %c0_5], %5 {strides = array<i32>} : memref<32x144xf32, #tpu.memory_space<vmem>>, vector<32x16xf32>,
    %7 = vector.extract_strided_slice %4 {offsets = [32, 0], sizes = [32, 16], strides = [1, 1]} : vector<288x16xf32> to vector<32x16xf32>
    %c0_6 = arith.constant 0 : index
    %c16 = arith.constant 16 : index
    %8 = vector.load %arg5[%c0_6, %c16] : memref<32x144xf32, #tpu.memory_space<vmem>>, vector<32x16xf32>
    tpu.vector_store %arg5[%c0_6, %c16], %7 {strides = array<i32>} : memref<32x144xf32, #tpu.memory_space<vmem>>, vector<32x16xf32>,
    %9 = vector.extract_strided_slice %4 {offsets = [64, 0], sizes = [32, 16], strides = [1, 1]} : vector<288x16xf32> to vector<32x16xf32>
    %c0_7 = arith.constant 0 : index
    %c32 = arith.constant 32 : index
    %10 = vector.load %arg5[%c0_7, %c32] : memref<32x144xf32, #tpu.memory_space<vmem>>, vector<32x16xf32>
    tpu.vector_store %arg5[%c0_7, %c32], %9 {strides = array<i32>} : memref<32x144xf32, #tpu.memory_space<vmem>>, vector<32x16xf32>,
    %11 = vector.extract_strided_slice %4 {offsets = [96, 0], sizes = [32, 16], strides = [1, 1]} : vector<288x16xf32> to vector<32x16xf32>
    %c0_8 = arith.constant 0 : index
    %c48 = arith.constant 48 : index
    %12 = vector.load %arg5[%c0_8, %c48] : memref<32x144xf32, #tpu.memory_space<vmem>>, vector<32x16xf32>
    tpu.vector_store %arg5[%c0_8, %c48], %11 {strides = array<i32>} : memref<32x144xf32, #tpu.memory_space<vmem>>, vector<32x16xf32>,
    %13 = vector.extract_strided_slice %4 {offsets = [128, 0], sizes = [32, 16], strides = [1, 1]} : vector<288x16xf32> to vector<32x16xf32>
    %c0_9 = arith.constant 0 : index
    %c64 = arith.constant 64 : index
    %14 = vector.load %arg5[%c0_9, %c64] : memref<32x144xf32, #tpu.memory_space<vmem>>, vector<32x16xf32>
    tpu.vector_store %arg5[%c0_9, %c64], %13 {strides = array<i32>} : memref<32x144xf32, #tpu.memory_space<vmem>>, vector<32x16xf32>,
    %15 = vector.extract_strided_slice %4 {offsets = [160, 0], sizes = [32, 16], strides = [1, 1]} : vector<288x16xf32> to vector<32x16xf32>
    %c0_10 = arith.constant 0 : index
    %c80 = arith.constant 80 : index
    %16 = vector.load %arg5[%c0_10, %c80] : memref<32x144xf32, #tpu.memory_space<vmem>>, vector<32x16xf32>
    tpu.vector_store %arg5[%c0_10, %c80], %15 {strides = array<i32>} : memref<32x144xf32, #tpu.memory_space<vmem>>, vector<32x16xf32>,
    %17 = vector.extract_strided_slice %4 {offsets = [192, 0], sizes = [32, 16], strides = [1, 1]} : vector<288x16xf32> to vector<32x16xf32>
    %c0_11 = arith.constant 0 : index
    %c96 = arith.constant 96 : index
    %18 = vector.load %arg5[%c0_11, %c96] : memref<32x144xf32, #tpu.memory_space<vmem>>, vector<32x16xf32>
    tpu.vector_store %arg5[%c0_11, %c96], %17 {strides = array<i32>} : memref<32x144xf32, #tpu.memory_space<vmem>>, vector<32x16xf32>,
    %19 = vector.extract_strided_slice %4 {offsets = [224, 0], sizes = [32, 16], strides = [1, 1]} : vector<288x16xf32> to vector<32x16xf32>
    %c0_12 = arith.constant 0 : index
    %c112 = arith.constant 112 : index
    %20 = vector.load %arg5[%c0_12, %c112] : memref<32x144xf32, #tpu.memory_space<vmem>>, vector<32x16xf32>
    tpu.vector_store %arg5[%c0_12, %c112], %19 {strides = array<i32>} : memref<32x144xf32, #tpu.memory_space<vmem>>, vector<32x16xf32>,
    %21 = vector.extract_strided_slice %4 {offsets = [256, 0], sizes = [32, 16], strides = [1, 1]} : vector<288x16xf32> to vector<32x16xf32>
    %c0_13 = arith.constant 0 : index
    %c128 = arith.constant 128 : index
    %22 = vector.load %arg5[%c0_13, %c128] : memref<32x144xf32, #tpu.memory_space<vmem>>, vector<32x16xf32>
    tpu.vector_store %arg5[%c0_13, %c128], %21 {strides = array<i32>} : memref<32x144xf32, #tpu.memory_space<vmem>>, vector<32x16xf32>,
    %c0_14 = arith.constant 0 : index
    %c0_15 = arith.constant 0 : index
    %23 = vector.load %arg5[%c0_14, %c0_15] : memref<32x144xf32, #tpu.memory_space<vmem>>, vector<32x144xf32>
    %24 = arith.truncf %23 : vector<32x144xf32> to vector<32x144xbf16>
    %c0_16 = arith.constant 0 : index
    %c0_17 = arith.constant 0 : index
    %25 = vector.load %arg2[%c0_16, %c0_17] : memref<144x32xbf16, #tpu.memory_space<vmem>>, vector<144x32xbf16>
    %cst_18 = arith.constant dense<0.000000e+00> : vector<32x32xf32>
    %26 = tpu.matmul %24, %25, %cst_18 {dimension_numbers = #tpu.dot_dimension_numbers<[1], [0], [0], [1], [0, 0, 1, 1], [], []>} : vector<32x144xbf16>, vector<144x32xbf16>, vector<32x32xf32> -> vector<32x32xf32>
    %c0_19 = arith.constant 0 : index
    %c0_20 = arith.constant 0 : index
    %27 = vector.load %arg3[%c0_19, %c0_20] : memref<1x32xf32, #tpu.memory_space<vmem>>, vector<1x32xf32>
    %28 = vector.broadcast %27 : vector<1x32xf32> to vector<32x32xf32>
    %29 = arith.addf %26, %28 : vector<32x32xf32>
    %cst_21 = arith.constant 0.000000e+00 : f32
    %30 = vector.broadcast %cst_21 : f32 to vector<32x32xf32>
    %31 = arith.maximumf %29, %30 : vector<32x32xf32>
    %32 = vector.extract_strided_slice %31 {offsets = [0, 0], sizes = [8, 32], strides = [1, 1]} : vector<32x32xf32> to vector<8x32xf32>
    %c0_22 = arith.constant 0 : index
    %c0_23 = arith.constant 0 : index
    %33 = vector.load %arg4[%c0_22, %c0_23] : memref<8x128xf32, #tpu.memory_space<vmem>>, vector<8x32xf32>
    tpu.vector_store %arg4[%c0_22, %c0_23], %32 {strides = array<i32>} : memref<8x128xf32, #tpu.memory_space<vmem>>, vector<8x32xf32>,
    %34 = vector.extract_strided_slice %31 {offsets = [8, 0], sizes = [8, 32], strides = [1, 1]} : vector<32x32xf32> to vector<8x32xf32>
    %c0_24 = arith.constant 0 : index
    %c32_25 = arith.constant 32 : index
    %35 = vector.load %arg4[%c0_24, %c32_25] : memref<8x128xf32, #tpu.memory_space<vmem>>, vector<8x32xf32>
    tpu.vector_store %arg4[%c0_24, %c32_25], %34 {strides = array<i32>} : memref<8x128xf32, #tpu.memory_space<vmem>>, vector<8x32xf32>,
    %36 = vector.extract_strided_slice %31 {offsets = [16, 0], sizes = [8, 32], strides = [1, 1]} : vector<32x32xf32> to vector<8x32xf32>
    %c0_26 = arith.constant 0 : index
    %c64_27 = arith.constant 64 : index
    %37 = vector.load %arg4[%c0_26, %c64_27] : memref<8x128xf32, #tpu.memory_space<vmem>>, vector<8x32xf32>
    tpu.vector_store %arg4[%c0_26, %c64_27], %36 {strides = array<i32>} : memref<8x128xf32, #tpu.memory_space<vmem>>, vector<8x32xf32>,
    %38 = vector.extract_strided_slice %31 {offsets = [24, 0], sizes = [8, 32], strides = [1, 1]} : vector<32x32xf32> to vector<8x32xf32>
    %c0_28 = arith.constant 0 : index
    %c96_29 = arith.constant 96 : index
    %39 = vector.load %arg4[%c0_28, %c96_29] : memref<8x128xf32, #tpu.memory_space<vmem>>, vector<8x32xf32>
    tpu.vector_store %arg4[%c0_28, %c96_29], %38 {strides = array<i32>} : memref<8x128xf32, #tpu.memory_space<vmem>>, vector<8x32xf32>,
    return
  }
}

</mosaic_0001>

<llo_original>
// kernel: model_forward.1
$region0: #{model_forward.1}
  #allocation0 [shape = 'u32[]', space=smem, size = 0x4, offset = 0x4, fixed_abs, tag = 'smem constant byte address 0x4 - core index']
  #allocation1 [shape = 'u32[144,128]{1,0:T(1,128)}', space=vmem, size = 0x12000, scoped, tag = 'internal scratch']
  #allocation2 [shape = 'f32[32,144]{1,0:T(8,128)}', space=vmem, size = 0x8000, scoped, tag = 'scratch operand']
  %s0 = inlined_call_operand.vmem [shape: bf16[288,73], index: 0, kind: input, shape index: {}]
  %s1 = inlined_call_operand.vmem [shape: bf16[73,16], index: 1, kind: input, shape index: {}]
  %s2 = inlined_call_operand.vmem [shape: bf16[144,32], index: 2, kind: input, shape index: {}]
  %s3 = inlined_call_operand.vmem [shape: f32[1,32], index: 3, kind: input, shape index: {}]
  %s4 = inlined_call_operand.vmem [shape: f32[8,128], index: 4, kind: output, shape index: {}]
  %s5 = sld [smem:[#allocation0]]
  $region26: #{model_forward.1} parent=0
    _
  %s7 = ssub.s32 1, %s5
  %s8 = scalar_select 0, %s7, %s5
  // Predicated region
  $region2: #{model_forward.1} parent=0 // pred_check
    _
  $region3: #{model_forward.1} parent=0 // pred_check_branch
    %10 = sbr.rel (0) target = $region5
  $region4: #{model_forward.1} parent=0 // pred_region
    _
  $region5: #{model_forward.1} parent=0 // pred_fallthru
    _
  // Predicated region
  $region6: #{model_forward.1} parent=0 // pred_check
    _
  $region7: #{model_forward.1} parent=0 // pred_check_branch
    %12 = sbr.rel (0) target = $region9
  $region8: #{model_forward.1} parent=0 // pred_region
    _
  $region9: #{model_forward.1} parent=0 // pred_fallthru
    _
  // Predicated region
  $region10: #{model_forward.1} parent=0 // pred_check
    _
  $region11: #{model_forward.1} parent=0 // pred_check_branch
    %14 = sbr.rel (0) target = $region13
  $region12: #{model_forward.1} parent=0 // pred_region
    _
  $region13: #{model_forward.1} parent=0 // pred_fallthru
    _
  // Predicated region
  $region14: #{model_forward.1} parent=0 // pred_check
    _
  $region15: #{model_forward.1} parent=0 // pred_check_branch
    %16 = sbr.rel (0) target = $region17
  $region16: #{model_forward.1} parent=0 // pred_region
    _
  $region17: #{model_forward.1} parent=0 // pred_fallthru
    _
  %v18 = vld [vmem:[%s0] sm:$0xf]
  %v19 = vld [vmem:[%s0 + $0x4] sm:$0xf]
  %v20 = vld [vmem:[%s0 + $0x8] sm:$0xf]
  %v21 = vld [vmem:[%s0 + $0xc] sm:$0xf]
  %v22 = vld [vmem:[%s0 + $0x10] sm:$0xf]
  %v23 = vld [vmem:[%s0 + $0x14] sm:$0xf]
  %v24 = vld [vmem:[%s0 + $0x18] sm:$0xf]
  %v25 = vld [vmem:[%s0 + $0x1c] sm:$0xf]
  %v26 = vld [vmem:[%s0 + $0x20] sm:$0xf]
  %v27 = vld [vmem:[%s0 + $0x24] sm:$0xf]
  %v28 = vld [vmem:[%s0 + $0x28] sm:$0xf]
  %v29 = vld [vmem:[%s0 + $0x2c] sm:$0xf]
  %v30 = vld [vmem:[%s0 + $0x30] sm:$0xf]
  %v31 = vld [vmem:[%s0 + $0x34] sm:$0xf]
  %v32 = vld [vmem:[%s0 + $0x38] sm:$0xf]
  %v33 = vld [vmem:[%s0 + $0x3c] sm:$0xf]
  %v34 = vld [vmem:[%s0 + $0x40] sm:$0xf]
  %v35 = vld [vmem:[%s0 + $0x44] sm:$0xf]
  %v36 = vld [vmem:[%s0 + $0x48] sm:$0xf]
  %v37 = vld [vmem:[%s0 + $0x4c] sm:$0xf]
  %v38 = vld [vmem:[%s0 + $0x50] sm:$0xf]
  %v39 = vld [vmem:[%s0 + $0x54] sm:$0xf]
  %v40 = vld [vmem:[%s0 + $0x58] sm:$0xf]
  %v41 = vld [vmem:[%s0 + $0x5c] sm:$0xf]
  %v42 = vld [vmem:[%s0 + $0x60] sm:$0xf]
  %v43 = vld [vmem:[%s0 + $0x64] sm:$0xf]
  %v44 = vld [vmem:[%s0 + $0x68] sm:$0xf]
  %v45 = vld [vmem:[%s0 + $0x6c] sm:$0xf]
  %v46 = vld [vmem:[%s0 + $0x70] sm:$0xf]
  %v47 = vld [vmem:[%s0 + $0x74] sm:$0xf]
  %v48 = vld [vmem:[%s0 + $0x78] sm:$0xf]
  %v49 = vld [vmem:[%s0 + $0x7c] sm:$0xf]
  %v50 = vld [vmem:[%s0 + $0x80] sm:$0xf]
  %v51 = vld [vmem:[%s0 + $0x84] sm:$0xf]
  %v52 = vld [vmem:[%s0 + $0x88] sm:$0xf]
  %v53 = vld [vmem:[%s0 + $0x8c] sm:$0xf]
  %v54 = vld [vmem:[%s1] sm:$0xf]
  %v55 = vld [vmem:[%s1 + $0x4] sm:$0xf]
  %v56 = vld [vmem:[%s1 + $0x8] sm:$0xf]
  %v57 = vld [vmem:[%s1 + $0xc] sm:$0xf]
  %v58 = vld [vmem:[%s1 + $0x10] sm:$0xf]
  %v59 = vld [vmem:[%s1 + $0x14] sm:$0xf]
  %v60 = vld [vmem:[%s1 + $0x18] sm:$0xf]
  %v61 = vld [vmem:[%s1 + $0x1c] sm:$0xf]
  %v62 = vld [vmem:[%s1 + $0x20] sm:$0xf]
  %v63 = vld [vmem:[%s1 + $0x24] sm:$0x1]
  %v100 = vunpack.c.l.b16 %v18
  %v101 = vunpack.c.l.b16 %v19
  %v102 = vunpack.c.l.b16 %v20
  %v103 = vunpack.c.l.b16 %v21
  %v104 = vunpack.c.l.b16 %v22
  %v105 = vunpack.c.l.b16 %v23
  %v106 = vunpack.c.l.b16 %v24
  %v107 = vunpack.c.l.b16 %v25
  %v108 = vunpack.c.l.b16 %v26
  %v109 = vunpack.c.l.b16 %v27
  %v110 = vunpack.c.l.b16 %v28
  %v111 = vunpack.c.l.b16 %v29
  %v112 = vunpack.c.l.b16 %v30
  %v113 = vunpack.c.l.b16 %v31
  %v114 = vunpack.c.l.b16 %v32
  %v115 = vunpack.c.l.b16 %v33
  %v116 = vunpack.c.l.b16 %v34
  %v117 = vunpack.c.l.b16 %v35
  %v118 = vunpack.c.l.b16 %v36
  %v119 = vunpack.c.l.b16 %v37
  %v120 = vunpack.c.l.b16 %v38
  %v121 = vunpack.c.l.b16 %v39
  %v122 = vunpack.c.l.b16 %v40
  %v123 = vunpack.c.l.b16 %v41
  %v124 = vunpack.c.l.b16 %v42
  %v125 = vunpack.c.l.b16 %v43
  %v126 = vunpack.c.l.b16 %v44
  %v127 = vunpack.c.l.b16 %v45
  %v128 = vunpack.c.l.b16 %v46
  %v129 = vunpack.c.l.b16 %v47
  %v130 = vunpack.c.l.b16 %v48
  %v131 = vunpack.c.l.b16 %v49
  %v132 = vunpack.c.l.b16 %v50
  %v133 = vunpack.c.l.b16 %v51
  %v134 = vunpack.c.l.b16 %v52
  %v135 = vunpack.c.l.b16 %v53
  %v136 = vpack.c.b16 %v101, %v100
  %v137 = vpack.c.b16 %v103, %v102
  %v138 = vpack.c.b16 %v105, %v104
  %v139 = vpack.c.b16 %v107, %v106
  %v140 = vpack.c.b16 %v109, %v108
  %v141 = vpack.c.b16 %v111, %v110
  %v142 = vpack.c.b16 %v113, %v112
  %v143 = vpack.c.b16 %v115, %v114
  %v144 = vpack.c.b16 %v117, %v116
  %v145 = vpack.c.b16 %v119, %v118
  %v146 = vpack.c.b16 %v121, %v120
  %v147 = vpack.c.b16 %v123, %v122
  %v148 = vpack.c.b16 %v125, %v124
  %v149 = vpack.c.b16 %v127, %v126
  %v150 = vpack.c.b16 %v129, %v128
  %v151 = vpack.c.b16 %v131, %v130
  %v152 = vpack.c.b16 %v133, %v132
  %v153 = vpack.c.b16 %v135, %v134
  %v164 = vunpack.c.l.b16 %v54
  %v165 = vunpack.c.l.b16 %v55
  %v166 = vunpack.c.l.b16 %v56
  %v167 = vunpack.c.l.b16 %v57
  %v168 = vunpack.c.l.b16 %v58
  %v169 = vunpack.c.l.b16 %v59
  %v170 = vunpack.c.l.b16 %v60
  %v171 = vunpack.c.l.b16 %v61
  %v172 = vunpack.c.l.b16 %v62
  %v173 = vunpack.c.l.b16 %v63
  %v174 = vpack.c.b16 %v165, %v164
  %v175 = vpack.c.b16 %v167, %v166
  %v176 = vpack.c.b16 %v169, %v168
  %v177 = vpack.c.b16 %v171, %v170
  %v178 = vpack.c.b16 %v173, %v172
  %vm183 = vcmask 596992
  %v185 = vsel %vm183, %v136, 0
  %v188 = vsel %vm183, %v137, 0
  %v191 = vsel %vm183, %v138, 0
  %v194 = vsel %vm183, %v139, 0
  %v197 = vsel %vm183, %v140, 0
  %v200 = vsel %vm183, %v141, 0
  %v203 = vsel %vm183, %v142, 0
  %v206 = vsel %vm183, %v143, 0
  %v209 = vsel %vm183, %v144, 0
  %v212 = vsel %vm183, %v145, 0
  %v215 = vsel %vm183, %v146, 0
  %v218 = vsel %vm183, %v147, 0
  %v221 = vsel %vm183, %v148, 0
  %v224 = vsel %vm183, %v149, 0
  %v227 = vsel %vm183, %v150, 0
  %v230 = vsel %vm183, %v151, 0
  %v233 = vsel %vm183, %v152, 0
  %v236 = vsel %vm183, %v153, 0
  %vm238 = vcmask 1043456
  %vm239 = vcmask 1044480
  %v240 = vsel %vm238, 4294967295, 65535
  %v241 = vsel %vm239, %v240, 0
  %v243 = vand.u32 %v178, %v241
  %245 = vmatprep.subr.bf16.mxu0 0
  %246 = vmatpush1.bf16.msra.mxu0 %v174
  %247 = vmatprep.subr.bf16.mxu0 0
  %248 = vmatpush1.bf16.msra.mxu0 %v175
  %249 = vmatprep.subr.bf16.mxu0 0
  %250 = vmatpush1.bf16.msra.mxu0 %v176
  %251 = vmatprep.subr.bf16.mxu0 0
  %252 = vmatpush1.bf16.msra.mxu0 %v177
  %253 = vmatprep.subr.bf16.mxu0 0
  %254 = vmatpush1.bf16.msra.mxu0 %v243
  %255 = vmatprep.subr.bf16.mxu0 0
  %256 = vmatpush1.bf16.msra.mxu0 0
  %257 = vmatprep.subr.bf16.mxu0 0
  %258 = vmatpush1.bf16.msra.mxu0 0
  %259 = vmatprep.subr.bf16.mxu0 0
  %260 = vmatpush1.bf16.msra.mxu0 0
  %261 = vmatprep.subr.bf16.mxu0 0
  %262 = vmatpush1.bf16.msra.mxu0 0
  %263 = vmatprep.subr.bf16.mxu0 0
  %264 = vmatpush1.bf16.msra.mxu0 0
  %265 = vmatprep.subr.bf16.mxu0 0
  %266 = vmatpush1.bf16.msra.mxu0 0
  %267 = vmatprep.subr.bf16.mxu0 0
  %268 = vmatpush1.bf16.msra.mxu0 0
  %269 = vmatprep.subr.bf16.mxu0 0
  %270 = vmatpush1.bf16.msra.mxu0 0
  %271 = vmatprep.subr.bf16.mxu0 0
  %272 = vmatpush1.bf16.msra.mxu0 0
  %273 = vmatprep.subr.bf16.mxu0 0
  %274 = vmatpush1.bf16.msra.mxu0 0
  %275 = vmatprep.subr.bf16.mxu0 0
  %276 = vmatpush1.bf16.msra.mxu0 0
  %277 = vmatprep.mubr.bf16.mxu0 0
  %278 = vmatmul.mubr.bf16.gmra.mrb[0].mxu0 %v185
  %v279 = vpop.f32.mrb[0].mxu0
  %v280 = vadd.f32 0.0, %v279
  %v281 = vpop.f32.mrb[0].mxu0
  %v282 = vpop.f32.mrb[0].mxu0
  %v283 = vadd.f32 0.0, %v282
  %v284 = vpop.f32.mrb[0].mxu0
  %285 = vmatprep.mubr.bf16.mxu0 0
  %286 = vmatmul.mubr.bf16.gmra.mrb[0].mxu0 %v188
  %v287 = vpop.f32.mrb[0].mxu0
  %v288 = vadd.f32 0.0, %v287
  %v289 = vpop.f32.mrb[0].mxu0
  %v290 = vpop.f32.mrb[0].mxu0
  %v291 = vadd.f32 0.0, %v290
  %v292 = vpop.f32.mrb[0].mxu0
  %293 = vmatprep.mubr.bf16.mxu0 0
  %294 = vmatmul.mubr.bf16.gmra.mrb[0].mxu0 %v191
  %v295 = vpop.f32.mrb[0].mxu0
  %v296 = vadd.f32 0.0, %v295
  %v297 = vpop.f32.mrb[0].mxu0
  %v298 = vpop.f32.mrb[0].mxu0
  %v299 = vadd.f32 0.0, %v298
  %v300 = vpop.f32.mrb[0].mxu0
  %301 = vmatprep.mubr.bf16.mxu0 0
  %302 = vmatmul.mubr.bf16.gmra.mrb[0].mxu0 %v194
  %v303 = vpop.f32.mrb[0].mxu0
  %v304 = vadd.f32 0.0, %v303
  %v305 = vpop.f32.mrb[0].mxu0
  %v306 = vpop.f32.mrb[0].mxu0
  %v307 = vadd.f32 0.0, %v306
  %v308 = vpop.f32.mrb[0].mxu0
  %309 = vmatprep.mubr.bf16.mxu0 0
  %310 = vmatmul.mubr.bf16.gmra.mrb[0].mxu0 %v197
  %v311 = vpop.f32.mrb[0].mxu0
  %v312 = vadd.f32 0.0, %v311
  %v313 = vpop.f32.mrb[0].mxu0
  %v314 = vpop.f32.mrb[0].mxu0
  %v315 = vadd.f32 0.0, %v314
  %v316 = vpop.f32.mrb[0].mxu0
  %317 = vmatprep.mubr.bf16.mxu0 0
  %318 = vmatmul.mubr.bf16.gmra.mrb[0].mxu0 %v200
  %v319 = vpop.f32.mrb[0].mxu0
  %v320 = vadd.f32 0.0, %v319
  %v321 = vpop.f32.mrb[0].mxu0
  %v322 = vpop.f32.mrb[0].mxu0
  %v323 = vadd.f32 0.0, %v322
  %v324 = vpop.f32.mrb[0].mxu0
  %325 = vmatprep.mubr.bf16.mxu0 0
  %326 = vmatmul.mubr.bf16.gmra.mrb[0].mxu0 %v203
  %v327 = vpop.f32.mrb[0].mxu0
  %v328 = vadd.f32 0.0, %v327
  %v329 = vpop.f32.mrb[0].mxu0
  %v330 = vpop.f32.mrb[0].mxu0
  %v331 = vadd.f32 0.0, %v330
  %v332 = vpop.f32.mrb[0].mxu0
  %333 = vmatprep.mubr.bf16.mxu0 0
  %334 = vmatmul.mubr.bf16.gmra.mrb[0].mxu0 %v206
  %v335 = vpop.f32.mrb[0].mxu0
  %v336 = vadd.f32 0.0, %v335
  %v337 = vpop.f32.mrb[0].mxu0
  %v338 = vpop.f32.mrb[0].mxu0
  %v339 = vadd.f32 0.0, %v338
  %v340 = vpop.f32.mrb[0].mxu0
  %341 = vmatprep.mubr.bf16.mxu0 0
  %342 = vmatmul.mubr.bf16.gmra.mrb[0].mxu0 %v209
  %v343 = vpop.f32.mrb[0].mxu0
  %v344 = vadd.f32 0.0, %v343
  %v345 = vpop.f32.mrb[0].mxu0
  %v346 = vpop.f32.mrb[0].mxu0
  %v347 = vadd.f32 0.0, %v346
  %v348 = vpop.f32.mrb[0].mxu0
  %349 = vmatprep.mubr.bf16.mxu0 0
  %350 = vmatmul.mubr.bf16.gmra.mrb[0].mxu0 %v212
  %v351 = vpop.f32.mrb[0].mxu0
  %v352 = vadd.f32 0.0, %v351
  %v353 = vpop.f32.mrb[0].mxu0
  %v354 = vpop.f32.mrb[0].mxu0
  %v355 = vadd.f32 0.0, %v354
  %v356 = vpop.f32.mrb[0].mxu0
  %357 = vmatprep.mubr.bf16.mxu0 0
  %358 = vmatmul.mubr.bf16.gmra.mrb[0].mxu0 %v215
  %v359 = vpop.f32.mrb[0].mxu0
  %v360 = vadd.f32 0.0, %v359
  %v361 = vpop.f32.mrb[0].mxu0
  %v362 = vpop.f32.mrb[0].mxu0
  %v363 = vadd.f32 0.0, %v362
  %v364 = vpop.f32.mrb[0].mxu0
  %365 = vmatprep.mubr.bf16.mxu0 0
  %366 = vmatmul.mubr.bf16.gmra.mrb[0].mxu0 %v218
  %v367 = vpop.f32.mrb[0].mxu0
  %v368 = vadd.f32 0.0, %v367
  %v369 = vpop.f32.mrb[0].mxu0
  %v370 = vpop.f32.mrb[0].mxu0
  %v371 = vadd.f32 0.0, %v370
  %v372 = vpop.f32.mrb[0].mxu0
  %373 = vmatprep.mubr.bf16.mxu0 0
  %374 = vmatmul.mubr.bf16.gmra.mrb[0].mxu0 %v221
  %v375 = vpop.f32.mrb[0].mxu0
  %v376 = vadd.f32 0.0, %v375
  %v377 = vpop.f32.mrb[0].mxu0
  %v378 = vpop.f32.mrb[0].mxu0
  %v379 = vadd.f32 0.0, %v378
  %v380 = vpop.f32.mrb[0].mxu0
  %381 = vmatprep.mubr.bf16.mxu0 0
  %382 = vmatmul.mubr.bf16.gmra.mrb[0].mxu0 %v224
  %v383 = vpop.f32.mrb[0].mxu0
  %v384 = vadd.f32 0.0, %v383
  %v385 = vpop.f32.mrb[0].mxu0
  %v386 = vpop.f32.mrb[0].mxu0
  %v387 = vadd.f32 0.0, %v386
  %v388 = vpop.f32.mrb[0].mxu0
  %389 = vmatprep.mubr.bf16.mxu0 0
  %390 = vmatmul.mubr.bf16.gmra.mrb[0].mxu0 %v227
  %v391 = vpop.f32.mrb[0].mxu0
  %v392 = vadd.f32 0.0, %v391
  %v393 = vpop.f32.mrb[0].mxu0
  %v394 = vpop.f32.mrb[0].mxu0
  %v395 = vadd.f32 0.0, %v394
  %v396 = vpop.f32.mrb[0].mxu0
  %397 = vmatprep.mubr.bf16.mxu0 0
  %398 = vmatmul.mubr.bf16.gmra.mrb[0].mxu0 %v230
  %v399 = vpop.f32.mrb[0].mxu0
  %v400 = vadd.f32 0.0, %v399
  %v401 = vpop.f32.mrb[0].mxu0
  %v402 = vpop.f32.mrb[0].mxu0
  %v403 = vadd.f32 0.0, %v402
  %v404 = vpop.f32.mrb[0].mxu0
  %405 = vmatprep.mubr.bf16.mxu0 0
  %406 = vmatmul.mubr.bf16.gmra.mrb[0].mxu0 %v233
  %v407 = vpop.f32.mrb[0].mxu0
  %v408 = vadd.f32 0.0, %v407
  %v409 = vpop.f32.mrb[0].mxu0
  %v410 = vpop.f32.mrb[0].mxu0
  %v411 = vadd.f32 0.0, %v410
  %v412 = vpop.f32.mrb[0].mxu0
  %413 = vmatprep.mubr.bf16.mxu0 0
  %414 = vmatmul.mubr.bf16.gmra.mrb[0].mxu0 %v236
  %v415 = vpop.f32.mrb[0].mxu0
  %v416 = vadd.f32 0.0, %v415
  %v417 = vpop.f32.mrb[0].mxu0
  %v418 = vpop.f32.mrb[0].mxu0
  %v419 = vadd.f32 0.0, %v418
  %v420 = vpop.f32.mrb[0].mxu0
  %421 = vdwg.mxu0
  %v422 = vmax.f32 %v280, 0.0
  %v423 = vmax.f32 %v283, 0.0
  %v424 = vmax.f32 %v288, 0.0
  %v425 = vmax.f32 %v291, 0.0
  %v426 = vmax.f32 %v296, 0.0
  %v427 = vmax.f32 %v299, 0.0
  %v428 = vmax.f32 %v304, 0.0
  %v429 = vmax.f32 %v307, 0.0
  %v430 = vmax.f32 %v312, 0.0
  %v431 = vmax.f32 %v315, 0.0
  %v432 = vmax.f32 %v320, 0.0
  %v433 = vmax.f32 %v323, 0.0
  %v434 = vmax.f32 %v328, 0.0
  %v435 = vmax.f32 %v331, 0.0
  %v436 = vmax.f32 %v336, 0.0
  %v437 = vmax.f32 %v339, 0.0
  %v438 = vmax.f32 %v344, 0.0
  %v439 = vmax.f32 %v347, 0.0
  %v440 = vmax.f32 %v352, 0.0
  %v441 = vmax.f32 %v355, 0.0
  %v442 = vmax.f32 %v360, 0.0
  %v443 = vmax.f32 %v363, 0.0
  %v444 = vmax.f32 %v368, 0.0
  %v445 = vmax.f32 %v371, 0.0
  %v446 = vmax.f32 %v376, 0.0
  %v447 = vmax.f32 %v379, 0.0
  %v448 = vmax.f32 %v384, 0.0
  %v449 = vmax.f32 %v387, 0.0
  %v450 = vmax.f32 %v392, 0.0
  %v451 = vmax.f32 %v395, 0.0
  %v452 = vmax.f32 %v400, 0.0
  %v453 = vmax.f32 %v403, 0.0
  %v454 = vmax.f32 %v408, 0.0
  %v455 = vmax.f32 %v411, 0.0
  %v456 = vmax.f32 %v416, 0.0
  %v457 = vmax.f32 %v419, 0.0
  %vm458 = vcmask 130048
  %459 = vst.msk [vmem:[#allocation2] sm:$0xff] %vm458, %v422
  %460 = vst.msk [vmem:[#allocation2 + $0x10] sm:$0xff] %vm458, %v423
  %461 = vst.msk [vmem:[#allocation2 + $0x20] sm:$0xff] %vm458, %v424
  %462 = vst.msk [vmem:[#allocation2 + $0x30] sm:$0xff] %vm458, %v425
  %467 = vrot.lane.b32.xlu0 %v426, 16
  %v468 = vpop.permute.xlu0 %467
  %469 = vrot.lane.b32.xlu0 %v427, 16
  %v470 = vpop.permute.xlu0 %469
  %471 = vrot.lane.b32.xlu0 %v428, 16
  %v472 = vpop.permute.xlu0 %471
  %473 = vrot.lane.b32.xlu0 %v429, 16
  %v474 = vpop.permute.xlu0 %473
  %vm479 = vcmask 261248
  %480 = vst.msk [vmem:[#allocation2] sm:$0xff] %vm479, %v468
  %481 = vst.msk [vmem:[#allocation2 + $0x10] sm:$0xff] %vm479, %v470
  %482 = vst.msk [vmem:[#allocation2 + $0x20] sm:$0xff] %vm479, %v472
  %483 = vst.msk [vmem:[#allocation2 + $0x30] sm:$0xff] %vm479, %v474
  %488 = vrot.lane.b32.xlu0 %v430, 32
  %v489 = vpop.permute.xlu0 %488
  %490 = vrot.lane.b32.xlu0 %v431, 32
  %v491 = vpop.permute.xlu0 %490
  %492 = vrot.lane.b32.xlu0 %v432, 32
  %v493 = vpop.permute.xlu0 %492
  %494 = vrot.lane.b32.xlu0 %v433, 32
  %v495 = vpop.permute.xlu0 %494
  %vm500 = vcmask 392448
  %501 = vst.msk [vmem:[#allocation2] sm:$0xff] %vm500, %v489
  %502 = vst.msk [vmem:[#allocation2 + $0x10] sm:$0xff] %vm500, %v491
  %503 = vst.msk [vmem:[#allocation2 + $0x20] sm:$0xff] %vm500, %v493
  %504 = vst.msk [vmem:[#allocation2 + $0x30] sm:$0xff] %vm500, %v495
  %509 = vrot.lane.b32.xlu0 %v434, 48
  %v510 = vpop.permute.xlu0 %509
  %511 = vrot.lane.b32.xlu0 %v435, 48
  %v512 = vpop.permute.xlu0 %511
  %513 = vrot.lane.b32.xlu0 %v436, 48
  %v514 = vpop.permute.xlu0 %513
  %515 = vrot.lane.b32.xlu0 %v437, 48
  %v516 = vpop.permute.xlu0 %515
  %vm521 = vcmask 523648
  %522 = vst.msk [vmem:[#allocation2] sm:$0xff] %vm521, %v510
  %523 = vst.msk [vmem:[#allocation2 + $0x10] sm:$0xff] %vm521, %v512
  %524 = vst.msk [vmem:[#allocation2 + $0x20] sm:$0xff] %vm521, %v514
  %525 = vst.msk [vmem:[#allocation2 + $0x30] sm:$0xff] %vm521, %v516
  %530 = vrot.lane.b32.xlu0 %v438, 64
  %v531 = vpop.permute.xlu0 %530
  %532 = vrot.lane.b32.xlu0 %v439, 64
  %v533 = vpop.permute.xlu0 %532
  %534 = vrot.lane.b32.xlu0 %v440, 64
  %v535 = vpop.permute.xlu0 %534
  %536 = vrot.lane.b32.xlu0 %v441, 64
  %v537 = vpop.permute.xlu0 %536
  %vm542 = vcmask 654848
  %543 = vst.msk [vmem:[#allocation2] sm:$0xff] %vm542, %v531
  %544 = vst.msk [vmem:[#allocation2 + $0x10] sm:$0xff] %vm542, %v533
  %545 = vst.msk [vmem:[#allocation2 + $0x20] sm:$0xff] %vm542, %v535
  %546 = vst.msk [vmem:[#allocation2 + $0x30] sm:$0xff] %vm542, %v537
  %551 = vrot.lane.b32.xlu0 %v442, 80
  %v552 = vpop.permute.xlu0 %551
  %553 = vrot.lane.b32.xlu0 %v443, 80
  %v554 = vpop.permute.xlu0 %553
  %555 = vrot.lane.b32.xlu0 %v444, 80
  %v556 = vpop.permute.xlu0 %555
  %557 = vrot.lane.b32.xlu0 %v445, 80
  %v558 = vpop.permute.xlu0 %557
  %vm563 = vcmask 786048
  %564 = vst.msk [vmem:[#allocation2] sm:$0xff] %vm563, %v552
  %565 = vst.msk [vmem:[#allocation2 + $0x10] sm:$0xff] %vm563, %v554
  %566 = vst.msk [vmem:[#allocation2 + $0x20] sm:$0xff] %vm563, %v556
  %567 = vst.msk [vmem:[#allocation2 + $0x30] sm:$0xff] %vm563, %v558
  %572 = vrot.lane.b32.xlu0 %v446, 96
  %v573 = vpop.permute.xlu0 %572
  %574 = vrot.lane.b32.xlu0 %v447, 96
  %v575 = vpop.permute.xlu0 %574
  %576 = vrot.lane.b32.xlu0 %v448, 96
  %v577 = vpop.permute.xlu0 %576
  %578 = vrot.lane.b32.xlu0 %v449, 96
  %v579 = vpop.permute.xlu0 %578
  %vm584 = vcmask 917248
  %585 = vst.msk [vmem:[#allocation2] sm:$0xff] %vm584, %v573
  %586 = vst.msk [vmem:[#allocation2 + $0x10] sm:$0xff] %vm584, %v575
  %587 = vst.msk [vmem:[#allocation2 + $0x20] sm:$0xff] %vm584, %v577
  %588 = vst.msk [vmem:[#allocation2 + $0x30] sm:$0xff] %vm584, %v579
  %593 = vrot.lane.b32.xlu0 %v450, 112
  %v594 = vpop.permute.xlu0 %593
  %595 = vrot.lane.b32.xlu0 %v451, 112
  %v596 = vpop.permute.xlu0 %595
  %597 = vrot.lane.b32.xlu0 %v452, 112
  %v598 = vpop.permute.xlu0 %597
  %599 = vrot.lane.b32.xlu0 %v453, 112
  %v600 = vpop.permute.xlu0 %599
  %vm605 = vcmask 1048448
  %606 = vst.msk [vmem:[#allocation2] sm:$0xff] %vm605, %v594
  %607 = vst.msk [vmem:[#allocation2 + $0x10] sm:$0xff] %vm605, %v596
  %608 = vst.msk [vmem:[#allocation2 + $0x20] sm:$0xff] %vm605, %v598
  %609 = vst.msk [vmem:[#allocation2 + $0x30] sm:$0xff] %vm605, %v600
  %610 = vst.msk [vmem:[#allocation2 + $0x8] sm:$0xff] %vm458, %v454
  %611 = vst.msk [vmem:[#allocation2 + $0x18] sm:$0xff] %vm458, %v455
  %612 = vst.msk [vmem:[#allocation2 + $0x28] sm:$0xff] %vm458, %v456
  %613 = vst.msk [vmem:[#allocation2 + $0x38] sm:$0xff] %vm458, %v457
  %v614 = vld [vmem:[#allocation2] sm:$0xff]
  %v615 = vld [vmem:[#allocation2 + $0x8] sm:$0xff]
  %v616 = vld [vmem:[#allocation2 + $0x10] sm:$0xff]
  %v617 = vld [vmem:[#allocation2 + $0x18] sm:$0xff]
  %v618 = vld [vmem:[#allocation2 + $0x20] sm:$0xff]
  %v619 = vld [vmem:[#allocation2 + $0x28] sm:$0xff]
  %v620 = vld [vmem:[#allocation2 + $0x30] sm:$0xff]
  %v621 = vld [vmem:[#allocation2 + $0x38] sm:$0xff]
  %v622 = vpack.c.bf16 %v616, %v614
  %v623 = vpack.c.bf16 %v617, %v615
  %v624 = vpack.c.bf16 %v620, %v618
  %v625 = vpack.c.bf16 %v621, %v619
  %v626 = vld [vmem:[%s2] sm:$0xf]
  %v627 = vld [vmem:[%s2 + $0x4] sm:$0xf]
  %v628 = vld [vmem:[%s2 + $0x8] sm:$0xf]
  %v629 = vld [vmem:[%s2 + $0xc] sm:$0xf]
  %v630 = vld [vmem:[%s2 + $0x10] sm:$0xf]
  %v631 = vld [vmem:[%s2 + $0x14] sm:$0xf]
  %v632 = vld [vmem:[%s2 + $0x18] sm:$0xf]
  %v633 = vld [vmem:[%s2 + $0x1c] sm:$0xf]
  %v634 = vld [vmem:[%s2 + $0x20] sm:$0xf]
  %v635 = vld [vmem:[%s2 + $0x24] sm:$0xf]
  %v636 = vld [vmem:[%s2 + $0x28] sm:$0xf]
  %v637 = vld [vmem:[%s2 + $0x2c] sm:$0xf]
  %v638 = vld [vmem:[%s2 + $0x30] sm:$0xf]
  %v639 = vld [vmem:[%s2 + $0x34] sm:$0xf]
  %v640 = vld [vmem:[%s2 + $0x38] sm:$0xf]
  %v641 = vld [vmem:[%s2 + $0x3c] sm:$0xf]
  %v642 = vld [vmem:[%s2 + $0x40] sm:$0xf]
  %v643 = vld [vmem:[%s2 + $0x44] sm:$0xf]
  %v644 = vld [vmem:[%s3] sm:$0x1]
  %v646 = vlaneseq
  %v647 = vshrl.u32 %v646, 7
  %v648 = vsub.s32 0, %v647
  %v649 = vrot.slane %v644, %v648
  %v669 = vunpack.c.l.b16 %v626
  %v670 = vunpack.c.l.b16 %v627
  %v671 = vunpack.c.l.b16 %v628
  %v672 = vunpack.c.l.b16 %v629
  %v673 = vunpack.c.l.b16 %v630
  %v674 = vunpack.c.l.b16 %v631
  %v675 = vunpack.c.l.b16 %v632
  %v676 = vunpack.c.l.b16 %v633
  %v677 = vunpack.c.l.b16 %v634
  %v678 = vunpack.c.l.b16 %v635
  %v679 = vunpack.c.l.b16 %v636
  %v680 = vunpack.c.l.b16 %v637
  %v681 = vunpack.c.l.b16 %v638
  %v682 = vunpack.c.l.b16 %v639
  %v683 = vunpack.c.l.b16 %v640
  %v684 = vunpack.c.l.b16 %v641
  %v685 = vunpack.c.l.b16 %v642
  %v686 = vunpack.c.l.b16 %v643
  %v687 = vpack.c.b16 %v670, %v669
  %v688 = vpack.c.b16 %v672, %v671
  %v689 = vpack.c.b16 %v674, %v673
  %v690 = vpack.c.b16 %v676, %v675
  %v691 = vpack.c.b16 %v678, %v677
  %v692 = vpack.c.b16 %v680, %v679
  %v693 = vpack.c.b16 %v682, %v681
  %v694 = vpack.c.b16 %v684, %v683
  %v695 = vpack.c.b16 %v686, %v685
  %v706 = vsel %vm458, %v623, 0
  %v709 = vsel %vm458, %v625, 0
  %711 = vmatprep.subr.bf16.mxu0 0
  %712 = vmatpush1.bf16.msra.mxu0 %v687
  %713 = vmatprep.subr.bf16.mxu0 0
  %714 = vmatpush1.bf16.msra.mxu0 %v688
  %715 = vmatprep.subr.bf16.mxu0 0
  %716 = vmatpush1.bf16.msra.mxu0 %v689
  %717 = vmatprep.subr.bf16.mxu0 0
  %718 = vmatpush1.bf16.msra.mxu0 %v690
  %719 = vmatprep.subr.bf16.mxu0 0
  %720 = vmatpush1.bf16.msra.mxu0 %v691
  %721 = vmatprep.subr.bf16.mxu0 0
  %722 = vmatpush1.bf16.msra.mxu0 %v692
  %723 = vmatprep.subr.bf16.mxu0 0
  %724 = vmatpush1.bf16.msra.mxu0 %v693
  %725 = vmatprep.subr.bf16.mxu0 0
  %726 = vmatpush1.bf16.msra.mxu0 %v694
  %727 = vmatprep.subr.bf16.mxu0 0
  %728 = vmatpush1.bf16.msra.mxu0 %v695
  %729 = vmatprep.subr.bf16.mxu0 0
  %730 = vmatpush1.bf16.msra.mxu0 0
  %731 = vmatprep.subr.bf16.mxu0 0
  %732 = vmatpush1.bf16.msra.mxu0 0
  %733 = vmatprep.subr.bf16.mxu0 0
  %734 = vmatpush1.bf16.msra.mxu0 0
  %735 = vmatprep.subr.bf16.mxu0 0
  %736 = vmatpush1.bf16.msra.mxu0 0
  %737 = vmatprep.subr.bf16.mxu0 0
  %738 = vmatpush1.bf16.msra.mxu0 0
  %739 = vmatprep.subr.bf16.mxu0 0
  %740 = vmatpush1.bf16.msra.mxu0 0
  %741 = vmatprep.subr.bf16.mxu0 0
  %742 = vmatpush1.bf16.msra.mxu0 0
  %743 = vmatprep.mubr.bf16.mxu0 %v706
  %744 = vmatmul.mubr.bf16.gmra.mrb[0].mxu0 %v622
  %v745 = vpop.f32.mrb[0].mxu0
  %v746 = vadd.f32 %v649, %v745
  %v747 = vpop.f32.mrb[0].mxu0
  %v748 = vpop.f32.mrb[0].mxu0
  %v749 = vadd.f32 %v649, %v748
  %v750 = vpop.f32.mrb[0].mxu0
  %751 = vmatprep.mubr.bf16.mxu0 %v709
  %752 = vmatmul.mubr.bf16.gmra.mrb[0].mxu0 %v624
  %v753 = vpop.f32.mrb[0].mxu0
  %v754 = vadd.f32 %v649, %v753
  %v755 = vpop.f32.mrb[0].mxu0
  %v756 = vpop.f32.mrb[0].mxu0
  %v757 = vadd.f32 %v649, %v756
  %v758 = vpop.f32.mrb[0].mxu0
  %759 = vdwg.mxu0
  %v760 = vmax.f32 %v746, 0.0
  %v761 = vmax.f32 %v749, 0.0
  %v762 = vmax.f32 %v754, 0.0
  %v763 = vmax.f32 %v757, 0.0
  %vm764 = vcmask 261120
  %765 = vst.msk [vmem:[%s4] sm:$0xff] %vm764, %v760
  %767 = vrot.lane.b32.xlu0 %v761, 32
  %v768 = vpop.permute.xlu0 %767
  %vm770 = vcmask 523520
  %771 = vst.msk [vmem:[%s4] sm:$0xff] %vm770, %v768
  %773 = vrot.lane.b32.xlu0 %v762, 64
  %v774 = vpop.permute.xlu0 %773
  %vm776 = vcmask 785920
  %777 = vst.msk [vmem:[%s4] sm:$0xff] %vm776, %v774
  %779 = vrot.lane.b32.xlu0 %v763, 96
  %v780 = vpop.permute.xlu0 %779
  %vm782 = vcmask 1048320
  %783 = vst.msk [vmem:[%s4] sm:$0xff] %vm782, %v780
  // Predicated region
  $region18: #{model_forward.1} parent=0 // pred_check
    _
  $region19: #{model_forward.1} parent=0 // pred_check_branch
    %785 = sbr.rel (0) target = $region21
  $region20: #{model_forward.1} parent=0 // pred_region
    _
  $region21: #{model_forward.1} parent=0 // pred_fallthru
    _
  // Predicated region
  $region22: #{model_forward.1} parent=0 // pred_check
    _
  $region23: #{model_forward.1} parent=0 // pred_check_branch
    %787 = sbr.rel (0) target = $region25
  $region24: #{model_forward.1} parent=0 // pred_region
    _
  $region25: #{model_forward.1} parent=0 // pred_fallthru
    _

</llo_original>
